<compile_context>
chip_gen: v5e
topology: v5e:2x2
jax: 0.10.0
libtpu: 0.0.40
codegen_flags: <defaults>
</compile_context>

<pallas_src>
import functools
import math

import jax
import jax.numpy as jnp
from jax.experimental import pallas as pl
from jax.experimental.pallas import tpu as pltpu


_NEG_SLOPE = 0.01  # nn.LeakyReLU() default negative_slope


def _leaky(v):
    return jnp.where(v > 0, v, _NEG_SLOPE * v)


def _round_up(n, m):
    return ((n + m - 1) // m) * m


def _mm(a, w):
    return jnp.dot(a, w, preferred_element_type=jnp.float32)


def _nbytes(shape, dtype):
    return math.prod(shape) * jnp.dtype(dtype).itemsize


# ---------------------------------------------------------------------------
# Kernel 1: Decoder.forward (the spec module).
# ---------------------------------------------------------------------------
def _decoder_kernel(zc_ref,                       # [tb, L+C] bf16 (fused z|cond)
                    wd1_ref, bd1_ref,             # [L+C, HP] bf16, [1, HP] f32
                    wd2_ref, bd2_ref,             # [HP, HP] bf16, [1, HP] f32
                    wdo_ref, bdo_ref,             # [HP, out_pad] bf16, [1, out_pad] f32
                    out_ref):                     # [tb, out_pad] bf16
    h = _leaky(_mm(zc_ref[...], wd1_ref[...]) + bd1_ref[...])
    h = _leaky(_mm(h.astype(jnp.bfloat16), wd2_ref[...]) + bd2_ref[...])
    mean = _mm(h.astype(jnp.bfloat16), wdo_ref[...]) + bdo_ref[...]
    # Head weight/bias are pre-padded to out_pad lanes -> single unmasked store.
    out_ref[...] = jnp.maximum(mean, 0.0).astype(out_ref.dtype)


# ---------------------------------------------------------------------------
# Kernel 2: fused full CVAE forward (encoder + reparameterization + decoder).
# Packed output columns: [0, out_dim) = x_hat, [out_dim, out_dim+2L) = mean|log_var.
# ---------------------------------------------------------------------------
def _cvae_kernel(xc_ref, cond_ref, eps_ref,       # [tb,in+C] bf16, [tb,C] bf16, [tb,L] f32
                 we1_ref, be1_ref,                # encoder FC_input (fused x|cond)
                 we2_ref, be2_ref,                # encoder FC_hidden2
                 wmv_ref, bmv_ref,                # encoder heads, cols [out_dim, out_dim+2L)
                 wdz_ref, wdc_ref, bd1_ref,       # decoder FC_hidden, column-split
                 wd2_ref, bd2_ref,                # decoder FC_hidden2
                 wdo_ref, bdo_ref,                # decoder head, cols [0, out_dim)
                 out_ref,                         # [tb, out_pad] bf16
                 *, latent_dim, out_dim):
    # ----- Encoder -----
    h = _leaky(_mm(xc_ref[...], we1_ref[...]) + be1_ref[...])
    h = _leaky(_mm(h.astype(jnp.bfloat16), we2_ref[...]) + be2_ref[...])
    mvp = _mm(h.astype(jnp.bfloat16), wmv_ref[...]) + bmv_ref[...]   # zero outside mv cols
    mean = mvp[:, out_dim:out_dim + latent_dim]
    log_var = mvp[:, out_dim + latent_dim:out_dim + 2 * latent_dim]

    # ----- Reparameterization (f32): z = mean + exp(0.5*log_var) * eps -----
    z = mean + jnp.exp(0.5 * log_var) * eps_ref[...]

    # ----- Decoder (same math as Decoder.forward) -----
    hd = _leaky(_mm(z.astype(jnp.bfloat16), wdz_ref[...])
                + _mm(cond_ref[...], wdc_ref[...]) + bd1_ref[...])
    hd = _leaky(_mm(hd.astype(jnp.bfloat16), wd2_ref[...]) + bd2_ref[...])
    dec = _mm(hd.astype(jnp.bfloat16), wdo_ref[...]) + bdo_ref[...]  # zero outside x_hat cols

    # dec is exactly 0 in the mean/log_var columns (zero weight cols, ReLU(0)=0)
    # and mvp is exactly 0 in the x_hat columns -> one VPU add packs the slab.
    out_ref[...] = (jnp.maximum(dec, 0.0) + mvp).astype(out_ref.dtype)


# ---------------------------------------------------------------------------
# Parameters (torch.nn.Linear-style init), pre-transposed to [in, out], hidden
# lane-padded to 128, head weights scattered into pre-padded output columns.
# ---------------------------------------------------------------------------
def init_cvae_params(key, input_dim, hidden_dim, latent_dim, num_labels):
    cond_dim = num_labels + 2
    enc_in = input_dim + cond_dim
    dec_in = latent_dim + cond_dim
    out_dim = input_dim
    hp = _round_up(hidden_dim, 128)
    hpad = hp - hidden_dim
    dec_out_pad = _round_up(out_dim, 128)
    cvae_out_pad = _round_up(out_dim + 2 * latent_dim, 128)

    keys = jax.random.split(key, 7)

    def linear(k, in_dim, o_dim):
        kw, kb = jax.random.split(k)
        bound = 1.0 / (in_dim ** 0.5)
        w = jax.random.uniform(kw, (in_dim, o_dim), jnp.float32, -bound, bound)
        b = jax.random.uniform(kb, (1, o_dim), jnp.float32, -bound, bound)
        return w, b

    # Encoder FC_input on the fused [x|cond] slab; hidden lanes zero-padded.
    we1, be1 = linear(keys[0], enc_in, hidden_dim)
    we1 = jnp.pad(we1, ((0, 0), (0, hpad)))
    be1 = jnp.pad(be1, ((0, 0), (0, hpad)))

    we2, be2 = linear(keys[1], hidden_dim, hidden_dim)
    we2 = jnp.pad(we2, ((0, hpad), (0, hpad)))
    be2 = jnp.pad(be2, ((0, 0), (0, hpad)))

    # Encoder heads FC_mean | FC_var scattered into cols [out_dim, out_dim+2L).
    wmu, bmu = linear(keys[2], hidden_dim, latent_dim)
    wlv, blv = linear(keys[3], hidden_dim, latent_dim)
    wmv = jnp.zeros((hp, cvae_out_pad), jnp.float32)
    wmv = wmv.at[:hidden_dim, out_dim:out_dim + 2 * latent_dim].set(
        jnp.concatenate([wmu, wlv], axis=1))
    bmv = jnp.zeros((1, cvae_out_pad), jnp.float32)
    bmv = bmv.at[:, out_dim:out_dim + 2 * latent_dim].set(
        jnp.concatenate([bmu, blv], axis=1))

    # Decoder FC_hidden: full [z|cond] form (decoder-only kernel) and
    # column-split form (CVAE kernel, where z is produced in-kernel).
    wd1, bd1 = linear(keys[4], dec_in, hidden_dim)
    wd1 = jnp.pad(wd1, ((0, 0), (0, hpad)))
    bd1 = jnp.pad(bd1, ((0, 0), (0, hpad)))
    wdz = wd1[:latent_dim]
    wdc = wd1[latent_dim:]

    wd2, bd2 = linear(keys[5], hidden_dim, hidden_dim)
    wd2 = jnp.pad(wd2, ((0, hpad), (0, hpad)))
    bd2 = jnp.pad(bd2, ((0, 0), (0, hpad)))

    # Decoder head FC_mean: output columns pre-padded to a lane-dense slab.
    wdo, bdo = linear(keys[6], hidden_dim, out_dim)
    wdo_dec = jnp.zeros((hp, dec_out_pad), jnp.float32).at[:hidden_dim, :out_dim].set(wdo)
    bdo_dec = jnp.zeros((1, dec_out_pad), jnp.float32).at[:, :out_dim].set(bdo)
    wdo_cvae = jnp.zeros((hp, cvae_out_pad), jnp.float32).at[:hidden_dim, :out_dim].set(wdo)
    bdo_cvae = jnp.zeros((1, cvae_out_pad), jnp.float32).at[:, :out_dim].set(bdo)

    bf16 = jnp.bfloat16
    return dict(
        we1=we1.astype(bf16), be1=be1,
        we2=we2.astype(bf16), be2=be2,
        wmv=wmv.astype(bf16), bmv=bmv,
        wd1=wd1.astype(bf16), wdz=wdz.astype(bf16), wdc=wdc.astype(bf16), bd1=bd1,
        wd2=wd2.astype(bf16), bd2=bd2,
        wdo_dec=wdo_dec.astype(bf16), bdo_dec=bdo_dec,
        wdo_cvae=wdo_cvae.astype(bf16), bdo_cvae=bdo_cvae,
    )


def _onehot_cond(c, c2, num_labels):
    return jnp.concatenate(
        [jax.nn.one_hot(c, num_labels, dtype=jnp.float32),
         jax.nn.one_hot(c2, 2, dtype=jnp.float32)], axis=-1)


def _batch_tiling(b):
    """(tile_b, padded_batch): tiles are multiples of 16 (bf16 sublane packing),
    capped at 512 to amortize the ~0.35us per-grid-step overhead; batches > 512
    are split into >= 4 steps so both v7x TensorCores get >= 2 steps each."""
    bp = _round_up(b, 16)
    if bp <= 512:
        return bp, bp
    tile_b = min(512, _round_up(pl.cdiv(bp, 4), 16))
    return tile_b, _round_up(b, tile_b)


def _wspec(p):
    # Whole-tensor block, constant block index -> weight stays VMEM-resident
    # across the batch grid (pipeline elides the re-fetch).
    # (pl.Buffered(1) would halve resident weight VMEM on v7x at large hidden
    #  widths; a no-op at these sizes so it is left off.)
    return pl.BlockSpec(p.shape, lambda i: (0, 0))


def _compiler_params(block_bytes):
    # Double-buffered blocks + generous headroom, clamped under v7x's 64 MiB
    # physical VMEM (scoped default is 16/32 MiB depending on generation).
    limit = int(min(max(4 * block_bytes, 16 << 20), 60 << 20))
    return pltpu.CompilerParams(dimension_semantics=("parallel",),
                                vmem_limit_bytes=limit)


# ---------------------------------------------------------------------------
# Decoder.forward wrapper (the spec module).
# ---------------------------------------------------------------------------
@functools.partial(jax.jit, static_argnames=("num_labels", "out_dim"))
def decoder_forward(z, c, c2, params, *, num_labels, out_dim):
    B, _ = z.shape
    cond = _onehot_cond(c, c2, num_labels)
    zc = jnp.concatenate([z, cond], axis=-1).astype(jnp.bfloat16)  # fused [z|c|c2]
    in_w = zc.shape[1]
    hp = params["wd2"].shape[0]
    out_pad = params["wdo_dec"].shape[1]

    tile_b, bp = _batch_tiling(B)
    if bp != B:
        zc = jnp.pad(zc, ((0, bp - B), (0, 0)))

    weights = [params["wd1"], params["bd1"], params["wd2"], params["bd2"],
               params["wdo_dec"], params["bdo_dec"]]
    weight_bytes = sum(_nbytes(w.shape, w.dtype) for w in weights)
    act_in_bytes = _nbytes((tile_b, in_w), jnp.bfloat16)
    out_blk_bytes = _nbytes((tile_b, out_pad), jnp.bfloat16)
    block_bytes = act_in_bytes + weight_bytes + out_blk_bytes
    flops = 2 * bp * (in_w * hp + hp * hp + hp * out_pad)
    bytes_accessed = (act_in_bytes * (bp // tile_b) + weight_bytes
                      + _nbytes((bp, out_pad), jnp.bfloat16))

    packed = pl.pallas_call(
        _decoder_kernel,
        out_shape=jax.ShapeDtypeStruct((bp, out_pad), jnp.bfloat16),
        grid=(bp // tile_b,),
        in_specs=[pl.BlockSpec((tile_b, in_w), lambda i: (i, 0))]
                 + [_wspec(w) for w in weights],
        out_specs=pl.BlockSpec((tile_b, out_pad), lambda i: (i, 0)),
        compiler_params=_compiler_params(block_bytes),
        cost_estimate=pl.CostEstimate(flops=int(flops), transcendentals=0,
                                      bytes_accessed=int(bytes_accessed)),
    )(zc, *weights)

    # Torch module returns f32; the bf16 store halves the dominant writeback,
    # the tiny slice + upcast fuses into the surrounding XLA ops.
    return packed[:B, :out_dim].astype(jnp.float32)


# ---------------------------------------------------------------------------
# Fused full CVAE forward wrapper: returns (x_hat, mean, log_var).
# ---------------------------------------------------------------------------
@functools.partial(jax.jit, static_argnames=("num_labels",))
def cvae_forward(x, c, c2, eps, params, *, num_labels):
    B, input_dim = x.shape
    latent_dim = eps.shape[1]
    out_dim = input_dim
    cond = _onehot_cond(c, c2, num_labels)
    cond_dim = cond.shape[1]
    xc = jnp.concatenate([x, cond], axis=-1).astype(jnp.bfloat16)  # fused [x|c|c2]
    cond_b = cond.astype(jnp.bfloat16)
    eps_p = eps
    in_w = xc.shape[1]
    hp = params["wd2"].shape[0]
    out_pad = params["wdo_cvae"].shape[1]

    tile_b, bp = _batch_tiling(B)
    if bp != B:
        pad = ((0, bp - B), (0, 0))
        xc = jnp.pad(xc, pad)
        cond_b = jnp.pad(cond_b, pad)
        eps_p = jnp.pad(eps_p, pad)

    weights = [params["we1"], params["be1"], params["we2"], params["be2"],
               params["wmv"], params["bmv"],
               params["wdz"], params["wdc"], params["bd1"],
               params["wd2"], params["bd2"],
               params["wdo_cvae"], params["bdo_cvae"]]
    weight_bytes = sum(_nbytes(w.shape, w.dtype) for w in weights)
    act_in_bytes = (_nbytes((tile_b, in_w), jnp.bfloat16)
                    + _nbytes((tile_b, cond_dim), jnp.bfloat16)
                    + _nbytes((tile_b, latent_dim), jnp.float32))
    out_blk_bytes = _nbytes((tile_b, out_pad), jnp.bfloat16)
    block_bytes = act_in_bytes + weight_bytes + out_blk_bytes
    flops = 2 * bp * (in_w * hp + hp * hp + hp * out_pad
                      + (latent_dim + cond_dim) * hp + hp * hp + hp * out_pad)
    bytes_accessed = (act_in_bytes * (bp // tile_b) + weight_bytes
                      + _nbytes((bp, out_pad), jnp.bfloat16))

    kernel = functools.partial(_cvae_kernel, latent_dim=latent_dim, out_dim=out_dim)
    packed = pl.pallas_call(
        kernel,
        out_shape=jax.ShapeDtypeStruct((bp, out_pad), jnp.bfloat16),
        grid=(bp // tile_b,),
        in_specs=[pl.BlockSpec((tile_b, in_w), lambda i: (i, 0)),
                  pl.BlockSpec((tile_b, cond_dim), lambda i: (i, 0)),
                  pl.BlockSpec((tile_b, latent_dim), lambda i: (i, 0))]
                 + [_wspec(w) for w in weights],
        out_specs=pl.BlockSpec((tile_b, out_pad), lambda i: (i, 0)),
        compiler_params=_compiler_params(block_bytes),
        cost_estimate=pl.CostEstimate(flops=int(flops),
                                      transcendentals=int(bp * latent_dim),
                                      bytes_accessed=int(bytes_accessed)),
    )(xc, cond_b, eps_p, *weights)

    x_hat = packed[:B, :out_dim].astype(jnp.float32)
    mean = packed[:B, out_dim:out_dim + latent_dim].astype(jnp.float32)
    log_var = packed[:B, out_dim + latent_dim:out_dim + 2 * latent_dim].astype(jnp.float32)
    return x_hat, mean, log_var


# ---------------------------------------------------------------------------
# Pure-JAX references (mirror the kernel math, including bf16 matmul inputs,
# f32 accumulation and the final bf16 store rounding).
# ---------------------------------------------------------------------------
def decoder_forward_ref(z, c, c2, params, *, num_labels, out_dim):
    cond = _onehot_cond(c, c2, num_labels)
    zc = jnp.concatenate([z, cond], axis=-1).astype(jnp.bfloat16)
    h = _leaky(_mm(zc, params["wd1"]) + params["bd1"])
    h = _leaky(_mm(h.astype(jnp.bfloat16), params["wd2"]) + params["bd2"])
    mean = _mm(h.astype(jnp.bfloat16), params["wdo_dec"]) + params["bdo_dec"]
    x_hat = jnp.maximum(mean, 0.0).astype(jnp.bfloat16)
    return x_hat[:, :out_dim].astype(jnp.float32)


def cvae_forward_ref(x, c, c2, eps, params, *, num_labels):
    _, input_dim = x.shape
    L = eps.shape[1]
    out_dim = input_dim
    cond = _onehot_cond(c, c2, num_labels)
    xc = jnp.concatenate([x, cond], axis=-1).astype(jnp.bfloat16)
    cb = cond.astype(jnp.bfloat16)
    h = _leaky(_mm(xc, params["we1"]) + params["be1"])
    h = _leaky(_mm(h.astype(jnp.bfloat16), params["we2"]) + params["be2"])
    mvp = _mm(h.astype(jnp.bfloat16), params["wmv"]) + params["bmv"]
    mean = mvp[:, out_dim:out_dim + L]
    log_var = mvp[:, out_dim + L:out_dim + 2 * L]
    z = mean + jnp.exp(0.5 * log_var) * eps
    hd = _leaky(_mm(z.astype(jnp.bfloat16), params["wdz"])
                + _mm(cb, params["wdc"]) + params["bd1"])
    hd = _leaky(_mm(hd.astype(jnp.bfloat16), params["wd2"]) + params["bd2"])
    dec = _mm(hd.astype(jnp.bfloat16), params["wdo_cvae"]) + params["bdo_cvae"]
    packed = (jnp.maximum(dec, 0.0) + mvp).astype(jnp.bfloat16)
    return (packed[:, :out_dim].astype(jnp.float32),
            packed[:, out_dim:out_dim + L].astype(jnp.float32),
            packed[:, out_dim + L:out_dim + 2 * L].astype(jnp.float32))


if __name__ == "__main__":
    B, INPUT_DIM, HIDDEN_DIM, LATENT_DIM, NUM_LABELS = 8, 32, 64, 16, 6

    key = jax.random.PRNGKey(0)
    k_param, k_x, k_c, k_c2, k_eps, k_z = jax.random.split(key, 6)

    params = init_cvae_params(k_param, INPUT_DIM, HIDDEN_DIM, LATENT_DIM, NUM_LABELS)

    x = jax.random.normal(k_x, (B, INPUT_DIM), jnp.float32)
    c = jax.random.randint(k_c, (B,), 0, NUM_LABELS, jnp.int32)
    c2 = jax.random.randint(k_c2, (B,), 0, 2, jnp.int32)
    eps = jax.random.normal(k_eps, (B, LATENT_DIM), jnp.float32)   # reparam noise (glue)
    z = jax.random.normal(k_z, (B, LATENT_DIM), jnp.float32)       # latent for Decoder-only

    # Decoder-only (the spec module).
    x_hat_dec = decoder_forward(z, c, c2, params,
                                num_labels=NUM_LABELS, out_dim=INPUT_DIM)
    # Fused full CVAE forward (encoder + reparam + decoder).
    x_hat, mean, log_var = cvae_forward(x, c, c2, eps, params, num_labels=NUM_LABELS)
    jax.block_until_ready((x_hat_dec, x_hat, mean, log_var))

    # Sanity checks against pure-JAX references.
    xr_dec = decoder_forward_ref(z, c, c2, params,
                                 num_labels=NUM_LABELS, out_dim=INPUT_DIM)
    xr, mr, lr = cvae_forward_ref(x, c, c2, eps, params, num_labels=NUM_LABELS)

    assert x_hat_dec.shape == (B, INPUT_DIM)
    assert x_hat.shape == (B, INPUT_DIM)
    assert mean.shape == (B, LATENT_DIM) and log_var.shape == (B, LATENT_DIM)
    assert jnp.allclose(x_hat_dec, xr_dec, atol=2e-2, rtol=2e-2)
    assert jnp.allclose(x_hat, xr, atol=2e-2, rtol=2e-2)
    assert jnp.allclose(mean, mr, atol=2e-2, rtol=2e-2)
    assert jnp.allclose(log_var, lr, atol=2e-2, rtol=2e-2)

    print("KERNEL_OK")
</pallas_src>

<mosaic_0001>
module attributes {stable_mosaic.version = 11 : i64} {
  func.func @_decoder_kernel(%arg0: i32, %arg1: memref<16x24xbf16, #tpu.memory_space<vmem>>, %arg2: memref<24x128xbf16, #tpu.memory_space<vmem>>, %arg3: memref<1x128xf32, #tpu.memory_space<vmem>>, %arg4: memref<128x128xbf16, #tpu.memory_space<vmem>>, %arg5: memref<1x128xf32, #tpu.memory_space<vmem>>, %arg6: memref<128x128xbf16, #tpu.memory_space<vmem>>, %arg7: memref<1x128xf32, #tpu.memory_space<vmem>>, %arg8: memref<16x128xbf16, #tpu.memory_space<vmem>>) attributes {dimension_semantics = [#tpu.dimension_semantics<parallel>], iteration_bounds = array<i64: 1>, scalar_prefetch = 0 : i64, scratch_operands = 0 : i64, tpu.core_type = #tpu.core_type<tc>, window_params = [{transform_indices = @transform_0, window_bounds = array<i64: 16, 24>}, {pipeline_mode = #tpu.pipeline_mode<synchronous>, transform_indices = @transform_1, window_bounds = array<i64: 24, 128>}, {pipeline_mode = #tpu.pipeline_mode<synchronous>, transform_indices = @transform_2, window_bounds = array<i64: 1, 128>}, {pipeline_mode = #tpu.pipeline_mode<synchronous>, transform_indices = @transform_3, window_bounds = array<i64: 128, 128>}, {pipeline_mode = #tpu.pipeline_mode<synchronous>, transform_indices = @transform_4, window_bounds = array<i64: 1, 128>}, {pipeline_mode = #tpu.pipeline_mode<synchronous>, transform_indices = @transform_5, window_bounds = array<i64: 128, 128>}, {pipeline_mode = #tpu.pipeline_mode<synchronous>, transform_indices = @transform_6, window_bounds = array<i64: 1, 128>}, {transform_indices = @transform_7, window_bounds = array<i64: 16, 128>}]} {
    %c0 = arith.constant 0 : index
    %c0_0 = arith.constant 0 : index
    %0 = vector.load %arg1[%c0, %c0_0] : memref<16x24xbf16, #tpu.memory_space<vmem>>, vector<16x24xbf16>
    %c0_1 = arith.constant 0 : index
    %c0_2 = arith.constant 0 : index
    %1 = vector.load %arg2[%c0_1, %c0_2] : memref<24x128xbf16, #tpu.memory_space<vmem>>, vector<24x128xbf16>
    %cst = arith.constant dense<0.000000e+00> : vector<16x128xf32>
    %2 = tpu.matmul %0, %1, %cst {dimension_numbers = #tpu.dot_dimension_numbers<[1], [0], [0], [1], [0, 0, 1, 1], [], []>} : vector<16x24xbf16>, vector<24x128xbf16>, vector<16x128xf32> -> vector<16x128xf32>
    %c0_3 = arith.constant 0 : index
    %c0_4 = arith.constant 0 : index
    %3 = vector.load %arg3[%c0_3, %c0_4] : memref<1x128xf32, #tpu.memory_space<vmem>>, vector<1x128xf32>
    %4 = vector.broadcast %3 : vector<1x128xf32> to vector<16x128xf32>
    %5 = arith.addf %2, %4 : vector<16x128xf32>
    %cst_5 = arith.constant 0.000000e+00 : f32
    %6 = vector.broadcast %cst_5 : f32 to vector<16x128xf32>
    %7 = arith.cmpf ogt, %5, %6 : vector<16x128xf32>
    %cst_6 = arith.constant 0.00999999977 : f32
    %8 = vector.broadcast %cst_6 : f32 to vector<16x128xf32>
    %9 = arith.mulf %8, %5 : vector<16x128xf32>
    %10 = arith.select %7, %5, %9 : vector<16x128xi1>, vector<16x128xf32>
    %11 = arith.truncf %10 : vector<16x128xf32> to vector<16x128xbf16>
    %c0_7 = arith.constant 0 : index
    %c0_8 = arith.constant 0 : index
    %12 = vector.load %arg4[%c0_7, %c0_8] : memref<128x128xbf16, #tpu.memory_space<vmem>>, vector<128x128xbf16>
    %cst_9 = arith.constant dense<0.000000e+00> : vector<16x128xf32>
    %13 = tpu.matmul %11, %12, %cst_9 {dimension_numbers = #tpu.dot_dimension_numbers<[1], [0], [0], [1], [0, 0, 1, 1], [], []>} : vector<16x128xbf16>, vector<128x128xbf16>, vector<16x128xf32> -> vector<16x128xf32>
    %c0_10 = arith.constant 0 : index
    %c0_11 = arith.constant 0 : index
    %14 = vector.load %arg5[%c0_10, %c0_11] : memref<1x128xf32, #tpu.memory_space<vmem>>, vector<1x128xf32>
    %15 = vector.broadcast %14 : vector<1x128xf32> to vector<16x128xf32>
    %16 = arith.addf %13, %15 : vector<16x128xf32>
    %cst_12 = arith.constant 0.000000e+00 : f32
    %17 = vector.broadcast %cst_12 : f32 to vector<16x128xf32>
    %18 = arith.cmpf ogt, %16, %17 : vector<16x128xf32>
    %cst_13 = arith.constant 0.00999999977 : f32
    %19 = vector.broadcast %cst_13 : f32 to vector<16x128xf32>
    %20 = arith.mulf %19, %16 : vector<16x128xf32>
    %21 = arith.select %18, %16, %20 : vector<16x128xi1>, vector<16x128xf32>
    %22 = arith.truncf %21 : vector<16x128xf32> to vector<16x128xbf16>
    %c0_14 = arith.constant 0 : index
    %c0_15 = arith.constant 0 : index
    %23 = vector.load %arg6[%c0_14, %c0_15] : memref<128x128xbf16, #tpu.memory_space<vmem>>, vector<128x128xbf16>
    %cst_16 = arith.constant dense<0.000000e+00> : vector<16x128xf32>
    %24 = tpu.matmul %22, %23, %cst_16 {dimension_numbers = #tpu.dot_dimension_numbers<[1], [0], [0], [1], [0, 0, 1, 1], [], []>} : vector<16x128xbf16>, vector<128x128xbf16>, vector<16x128xf32> -> vector<16x128xf32>
    %c0_17 = arith.constant 0 : index
    %c0_18 = arith.constant 0 : index
    %25 = vector.load %arg7[%c0_17, %c0_18] : memref<1x128xf32, #tpu.memory_space<vmem>>, vector<1x128xf32>
    %26 = vector.broadcast %25 : vector<1x128xf32> to vector<16x128xf32>
    %27 = arith.addf %24, %26 : vector<16x128xf32>
    %cst_19 = arith.constant 0.000000e+00 : f32
    %28 = vector.broadcast %cst_19 : f32 to vector<16x128xf32>
    %29 = arith.maximumf %27, %28 : vector<16x128xf32>
    %30 = arith.truncf %29 : vector<16x128xf32> to vector<16x128xbf16>
    %c0_20 = arith.constant 0 : index
    %c0_21 = arith.constant 0 : index
    %31 = vector.load %arg8[%c0_20, %c0_21] : memref<16x128xbf16, #tpu.memory_space<vmem>>, vector<16x128xbf16>
    tpu.vector_store %arg8[%c0_20, %c0_21], %30 {strides = array<i32>} : memref<16x128xbf16, #tpu.memory_space<vmem>>, vector<16x128xbf16>,
    return
  }
  func.func @transform_0(%arg0: i32) -> (i32, i32) {
    %c0_i32 = arith.constant 0 : i32
    %c0_i32_0 = arith.constant 0 : i32
    return %arg0, %c0_i32 : i32, i32
  }
  func.func @transform_1(%arg0: i32) -> (i32, i32) {
    %c0_i32 = arith.constant 0 : i32
    %c0_i32_0 = arith.constant 0 : i32
    %c0_i32_1 = arith.constant 0 : i32
    return %c0_i32, %c0_i32_0 : i32, i32
  }
  func.func @transform_2(%arg0: i32) -> (i32, i32) {
    %c0_i32 = arith.constant 0 : i32
    %c0_i32_0 = arith.constant 0 : i32
    %c0_i32_1 = arith.constant 0 : i32
    return %c0_i32, %c0_i32_0 : i32, i32
  }
  func.func @transform_3(%arg0: i32) -> (i32, i32) {
    %c0_i32 = arith.constant 0 : i32
    %c0_i32_0 = arith.constant 0 : i32
    %c0_i32_1 = arith.constant 0 : i32
    return %c0_i32, %c0_i32_0 : i32, i32
  }
  func.func @transform_4(%arg0: i32) -> (i32, i32) {
    %c0_i32 = arith.constant 0 : i32
    %c0_i32_0 = arith.constant 0 : i32
    %c0_i32_1 = arith.constant 0 : i32
    return %c0_i32, %c0_i32_0 : i32, i32
  }
  func.func @transform_5(%arg0: i32) -> (i32, i32) {
    %c0_i32 = arith.constant 0 : i32
    %c0_i32_0 = arith.constant 0 : i32
    %c0_i32_1 = arith.constant 0 : i32
    return %c0_i32, %c0_i32_0 : i32, i32
  }
  func.func @transform_6(%arg0: i32) -> (i32, i32) {
    %c0_i32 = arith.constant 0 : i32
    %c0_i32_0 = arith.constant 0 : i32
    %c0_i32_1 = arith.constant 0 : i32
    return %c0_i32, %c0_i32_0 : i32, i32
  }
  func.func @transform_7(%arg0: i32) -> (i32, i32) {
    %c0_i32 = arith.constant 0 : i32
    %c0_i32_0 = arith.constant 0 : i32
    return %arg0, %c0_i32 : i32, i32
  }
}

</mosaic_0001>

<llo_original>
// kernel: decoder_forward.1
$region0: #{decoder_forward.1}
  #allocation0 [shape = 'u32[]', space=smem, size = 0x4, offset = 0x4, fixed_abs, tag = 'smem constant byte address 0x4 - core index']
  #allocation1 [shape = 'u32[72,128]{1,0:T(1,128)}', space=vmem, size = 0x9000, scoped, tag = 'internal scratch']
  %s0 = inlined_call_operand.vmem [shape: bf16[16,24], index: 0, kind: input, shape index: {}]
  %s1 = inlined_call_operand.vmem [shape: bf16[24,128], index: 1, kind: input, shape index: {}]
  %s2 = inlined_call_operand.vmem [shape: f32[1,128], index: 2, kind: input, shape index: {}]
  %s3 = inlined_call_operand.hbm [shape: bf16[128,128], index: 3, kind: input, shape index: {}]
  %s4 = inlined_call_operand.vmem [shape: f32[1,128], index: 4, kind: input, shape index: {}]
  %s5 = inlined_call_operand.hbm [shape: bf16[128,128], index: 5, kind: input, shape index: {}]
  %s6 = inlined_call_operand.vmem [shape: f32[1,128], index: 6, kind: input, shape index: {}]
  %s7 = inlined_call_operand.vmem [shape: bf16[16,128], index: 7, kind: output, shape index: {}]
  %s8 = sld [smem:[#allocation0]]
  $region46: #{decoder_forward.1} parent=0
    _
  %s10 = ssub.s32 1, %s8
  %s11 = scalar_select 0, %s10, %s8
  $region1: #{decoder_forward.1} parent=0
    #allocation2 [shape = 'u8[32768]{0}', space=vmem, size = 0x8000, scoped, tag = 'input window, operand 3, single buffered']
    #allocation3 [shape = 's32[1]{0}', space=sflag, size = 0x4, scoped, tag = 'scoped memory for decoder_forward.1']
    #allocation4 [shape = 'u8[32768]{0}', space=vmem, size = 0x8000, scoped, tag = 'input window, operand 5, single buffered']
    #allocation5 [shape = 's32[1]{0}', space=sflag, size = 0x4, scoped, tag = 'scoped memory for decoder_forward.1']
    %12 = vsyncpa [#allocation3], 0
    %13 = vsyncpa [#allocation5], 0
    // Predicated region
    $region2: #{decoder_forward.1} parent=1 // pred_check
      _
    $region3: #{decoder_forward.1} parent=1 // pred_check_branch
      %15 = sbr.rel (0) target = $region5
    $region4: #{decoder_forward.1} parent=1 // pred_region
      _
    $region5: #{decoder_forward.1} parent=1 // pred_fallthru
      _
    // Predicated region
    $region6: #{decoder_forward.1} parent=1 // pred_check
      _
    $region7: #{decoder_forward.1} parent=1 // pred_check_branch
      %17 = sbr.rel (0) target = $region9
    $region8: #{decoder_forward.1} parent=1 // pred_region
      _
    $region9: #{decoder_forward.1} parent=1 // pred_fallthru
      _
    // Predicated region
    $region10: #{decoder_forward.1} parent=1 // pred_check
      _
    $region11: #{decoder_forward.1} parent=1 // pred_check_branch
      %19 = sbr.rel (0) target = $region13
    $region12: #{decoder_forward.1} parent=1 // pred_region
      _
    $region13: #{decoder_forward.1} parent=1 // pred_fallthru
      _
    // Predicated region
    $region14: #{decoder_forward.1} parent=1 // pred_check
      _
    $region15: #{decoder_forward.1} parent=1 // pred_check_branch
      %21 = sbr.rel (0) target = $region17
    $region16: #{decoder_forward.1} parent=1 // pred_region
      %23 = vsyncadd [#allocation3], 0
      %s24 = sshll.u32 %s3, 4
      %s25 = int_to_ptr.hbm [resolvable:$true] %s24
      %s26 = sshll.u32 [#allocation2], 4
      %s27 = int_to_ptr.vmem [resolvable:$true] %s26
      %32 = dma.hbm_to_vmem [thread:$0]  %s25, 1024, %s27, [#allocation3], 64, 64, 4
    $region17: #{decoder_forward.1} parent=1 // pred_fallthru
      _
    // Predicated region
    $region18: #{decoder_forward.1} parent=1 // pred_check
      _
    $region19: #{decoder_forward.1} parent=1 // pred_check_branch
      %34 = sbr.rel (0) target = $region21
    $region20: #{decoder_forward.1} parent=1 // pred_region
      _
    $region21: #{decoder_forward.1} parent=1 // pred_fallthru
      _
    // Predicated region
    $region22: #{decoder_forward.1} parent=1 // pred_check
      _
    $region23: #{decoder_forward.1} parent=1 // pred_check_branch
      %36 = sbr.rel (0) target = $region25
    $region24: #{decoder_forward.1} parent=1 // pred_region
      %38 = vsyncadd [#allocation5], 0
      %s39 = sshll.u32 %s5, 4
      %s40 = int_to_ptr.hbm [resolvable:$true] %s39
      %s41 = sshll.u32 [#allocation4], 4
      %s42 = int_to_ptr.vmem [resolvable:$true] %s41
      %47 = dma.hbm_to_vmem [thread:$0]  %s40, 1024, %s42, [#allocation5], 64, 64, 4
    $region25: #{decoder_forward.1} parent=1 // pred_fallthru
      _
    // Predicated region
    $region26: #{decoder_forward.1} parent=1 // pred_check
      _
    $region27: #{decoder_forward.1} parent=1 // pred_check_branch
      %49 = sbr.rel (0) target = $region29
    $region28: #{decoder_forward.1} parent=1 // pred_region
      _
    $region29: #{decoder_forward.1} parent=1 // pred_fallthru
      _
    // Predicated region
    $region30: #{decoder_forward.1} parent=1 // pred_check
      _
    $region31: #{decoder_forward.1} parent=1 // pred_check_branch
      %51 = sbr.rel (0) target = $region33
    $region32: #{decoder_forward.1} parent=1 // pred_region
      %53 = dma.done [#allocation3], 1024
    $region33: #{decoder_forward.1} parent=1 // pred_fallthru
      _
    // Predicated region
    $region34: #{decoder_forward.1} parent=1 // pred_check
      _
    $region35: #{decoder_forward.1} parent=1 // pred_check_branch
      %55 = sbr.rel (0) target = $region37
    $region36: #{decoder_forward.1} parent=1 // pred_region
      %57 = dma.done [#allocation5], 1024
    $region37: #{decoder_forward.1} parent=1 // pred_fallthru
      _
    %v59 = vld [vmem:[%s0] sm:$0xf]
    %v60 = vld [vmem:[%s0 + $0x4] sm:$0xf]
    %v61 = vld [vmem:[%s1] sm:$0xf]
    %v62 = vld [vmem:[%s1 + $0x4] sm:$0xf]
    %v63 = vld [vmem:[%s1 + $0x8] sm:$0xf]
    %v64 = vld [vmem:[%s2] sm:$0x1]
    %v66 = vperm.slane %v64, 0
    %v70 = vunpack.c.l.b16 %v59
    %v71 = vunpack.c.l.b16 %v60
    %v72 = vpack.c.b16 %v71, %v70
    %v76 = vunpack.c.l.b16 %v61
    %v77 = vunpack.c.l.b16 %v62
    %v78 = vunpack.c.l.b16 %v63
    %v79 = vpack.c.b16 %v77, %v76
    %v80 = vpack.c.b16 %v78, %v78
    %vm82 = vcmask 195584
    %v84 = vsel %vm82, %v72, 0
    %vm86 = vcmask 1043456
    %v88 = vsel %vm86, %v80, 0
    %90 = vmatpush.bf16.msra.mxu0 0
    %91 = vmatpush.bf16.msra.mxu0 0
    %92 = vmatpush.bf16.msra.mxu0 0
    %93 = vmatpush.bf16.msra.mxu0 0
    %94 = vmatpush.bf16.msra.mxu0 0
    %95 = vmatpush.bf16.msra.mxu0 0
    %96 = vmatpush.bf16.msra.mxu0 %v88
    %97 = vmatpush.bf16.msra.mxu0 %v79
    %98 = vmatmul.bf16.gmra.mxu0 %v84
    %v99 = vpop.f32.mrf.mxu0
    %v100 = vadd.f32 %v66, %v99
    %v101 = vpop.f32.mrf.mxu0
    %v102 = vadd.f32 %v66, %v101
    %103 = vdwg.mxu0
    %vm104 = vcmp.gt.f32.partialorder %v100, 0.0
    %vm105 = vcmp.gt.f32.partialorder %v102, 0.0
    %v106 = vmul.f32 %v100, 0.01
    %v107 = vmul.f32 %v102, 0.01
    %v108 = vsel %vm104, %v100, %v106
    %v109 = vsel %vm105, %v102, %v107
    %v110 = vpack.c.bf16 %v109, %v108
    %v111 = vld [vmem:[#allocation2] sm:$0xf]
    %v112 = vld [vmem:[#allocation2 + $0x4] sm:$0xf]
    %v113 = vld [vmem:[#allocation2 + $0x8] sm:$0xf]
    %v114 = vld [vmem:[#allocation2 + $0xc] sm:$0xf]
    %v115 = vld [vmem:[#allocation2 + $0x10] sm:$0xf]
    %v116 = vld [vmem:[#allocation2 + $0x14] sm:$0xf]
    %v117 = vld [vmem:[#allocation2 + $0x18] sm:$0xf]
    %v118 = vld [vmem:[#allocation2 + $0x1c] sm:$0xf]
    %v119 = vld [vmem:[#allocation2 + $0x20] sm:$0xf]
    %v120 = vld [vmem:[#allocation2 + $0x24] sm:$0xf]
    %v121 = vld [vmem:[#allocation2 + $0x28] sm:$0xf]
    %v122 = vld [vmem:[#allocation2 + $0x2c] sm:$0xf]
    %v123 = vld [vmem:[#allocation2 + $0x30] sm:$0xf]
    %v124 = vld [vmem:[#allocation2 + $0x34] sm:$0xf]
    %v125 = vld [vmem:[#allocation2 + $0x38] sm:$0xf]
    %v126 = vld [vmem:[#allocation2 + $0x3c] sm:$0xf]
    %v127 = vld [vmem:[%s4] sm:$0x1]
    %v129 = vperm.slane %v127, 0
    %v147 = vunpack.c.l.b16 %v111
    %v148 = vunpack.c.l.b16 %v112
    %v149 = vunpack.c.l.b16 %v113
    %v150 = vunpack.c.l.b16 %v114
    %v151 = vunpack.c.l.b16 %v115
    %v152 = vunpack.c.l.b16 %v116
    %v153 = vunpack.c.l.b16 %v117
    %v154 = vunpack.c.l.b16 %v118
    %v155 = vunpack.c.l.b16 %v119
    %v156 = vunpack.c.l.b16 %v120
    %v157 = vunpack.c.l.b16 %v121
    %v158 = vunpack.c.l.b16 %v122
    %v159 = vunpack.c.l.b16 %v123
    %v160 = vunpack.c.l.b16 %v124
    %v161 = vunpack.c.l.b16 %v125
    %v162 = vunpack.c.l.b16 %v126
    %v163 = vpack.c.b16 %v148, %v147
    %v164 = vpack.c.b16 %v150, %v149
    %v165 = vpack.c.b16 %v152, %v151
    %v166 = vpack.c.b16 %v154, %v153
    %v167 = vpack.c.b16 %v156, %v155
    %v168 = vpack.c.b16 %v158, %v157
    %v169 = vpack.c.b16 %v160, %v159
    %v170 = vpack.c.b16 %v162, %v161
    %179 = vmatpush.bf16.msra.mxu0 %v170
    %180 = vmatpush.bf16.msra.mxu0 %v169
    %181 = vmatpush.bf16.msra.mxu0 %v168
    %182 = vmatpush.bf16.msra.mxu0 %v167
    %183 = vmatpush.bf16.msra.mxu0 %v166
    %184 = vmatpush.bf16.msra.mxu0 %v165
    %185 = vmatpush.bf16.msra.mxu0 %v164
    %186 = vmatpush.bf16.msra.mxu0 %v163
    %187 = vmatmul.bf16.gmra.mxu0 %v110
    %v188 = vpop.f32.mrf.mxu0
    %v189 = vadd.f32 %v129, %v188
    %v190 = vpop.f32.mrf.mxu0
    %v191 = vadd.f32 %v129, %v190
    %192 = vdwg.mxu0
    %vm193 = vcmp.gt.f32.partialorder %v189, 0.0
    %vm194 = vcmp.gt.f32.partialorder %v191, 0.0
    %v195 = vmul.f32 %v189, 0.01
    %v196 = vmul.f32 %v191, 0.01
    %v197 = vsel %vm193, %v189, %v195
    %v198 = vsel %vm194, %v191, %v196
    %v199 = vpack.c.bf16 %v198, %v197
    %v200 = vld [vmem:[#allocation4] sm:$0xf]
    %v201 = vld [vmem:[#allocation4 + $0x4] sm:$0xf]
    %v202 = vld [vmem:[#allocation4 + $0x8] sm:$0xf]
    %v203 = vld [vmem:[#allocation4 + $0xc] sm:$0xf]
    %v204 = vld [vmem:[#allocation4 + $0x10] sm:$0xf]
    %v205 = vld [vmem:[#allocation4 + $0x14] sm:$0xf]
    %v206 = vld [vmem:[#allocation4 + $0x18] sm:$0xf]
    %v207 = vld [vmem:[#allocation4 + $0x1c] sm:$0xf]
    %v208 = vld [vmem:[#allocation4 + $0x20] sm:$0xf]
    %v209 = vld [vmem:[#allocation4 + $0x24] sm:$0xf]
    %v210 = vld [vmem:[#allocation4 + $0x28] sm:$0xf]
    %v211 = vld [vmem:[#allocation4 + $0x2c] sm:$0xf]
    %v212 = vld [vmem:[#allocation4 + $0x30] sm:$0xf]
    %v213 = vld [vmem:[#allocation4 + $0x34] sm:$0xf]
    %v214 = vld [vmem:[#allocation4 + $0x38] sm:$0xf]
    %v215 = vld [vmem:[#allocation4 + $0x3c] sm:$0xf]
    %v216 = vld [vmem:[%s6] sm:$0x1]
    %v218 = vperm.slane %v216, 0
    %v236 = vunpack.c.l.b16 %v200
    %v237 = vunpack.c.l.b16 %v201
    %v238 = vunpack.c.l.b16 %v202
    %v239 = vunpack.c.l.b16 %v203
    %v240 = vunpack.c.l.b16 %v204
    %v241 = vunpack.c.l.b16 %v205
    %v242 = vunpack.c.l.b16 %v206
    %v243 = vunpack.c.l.b16 %v207
    %v244 = vunpack.c.l.b16 %v208
    %v245 = vunpack.c.l.b16 %v209
    %v246 = vunpack.c.l.b16 %v210
    %v247 = vunpack.c.l.b16 %v211
    %v248 = vunpack.c.l.b16 %v212
    %v249 = vunpack.c.l.b16 %v213
    %v250 = vunpack.c.l.b16 %v214
    %v251 = vunpack.c.l.b16 %v215
    %v252 = vpack.c.b16 %v237, %v236
    %v253 = vpack.c.b16 %v239, %v238
    %v254 = vpack.c.b16 %v241, %v240
    %v255 = vpack.c.b16 %v243, %v242
    %v256 = vpack.c.b16 %v245, %v244
    %v257 = vpack.c.b16 %v247, %v246
    %v258 = vpack.c.b16 %v249, %v248
    %v259 = vpack.c.b16 %v251, %v250
    %268 = vmatpush.bf16.msra.mxu0 %v259
    %269 = vmatpush.bf16.msra.mxu0 %v258
    %270 = vmatpush.bf16.msra.mxu0 %v257
    %271 = vmatpush.bf16.msra.mxu0 %v256
    %272 = vmatpush.bf16.msra.mxu0 %v255
    %273 = vmatpush.bf16.msra.mxu0 %v254
    %274 = vmatpush.bf16.msra.mxu0 %v253
    %275 = vmatpush.bf16.msra.mxu0 %v252
    %276 = vmatmul.bf16.gmra.mxu0 %v199
    %v277 = vpop.f32.mrf.mxu0
    %v278 = vadd.f32 %v218, %v277
    %v279 = vpop.f32.mrf.mxu0
    %v280 = vadd.f32 %v218, %v279
    %281 = vdwg.mxu0
    %v282 = vmax.f32 %v278, 0.0
    %v283 = vmax.f32 %v280, 0.0
    %v284 = vpack.c.bf16 %v282, %v282
    %v285 = vpack.c.bf16 %v283, %v283
    %286 = vst [vmem:[%s7] sm:$0xf] %v284
    %287 = vst [vmem:[%s7 + $0x4] sm:$0xf] %v285
    // Predicated region
    $region38: #{decoder_forward.1} parent=1 // pred_check
      _
    $region39: #{decoder_forward.1} parent=1 // pred_check_branch
      %289 = sbr.rel (0) target = $region41
    $region40: #{decoder_forward.1} parent=1 // pred_region
      _
    $region41: #{decoder_forward.1} parent=1 // pred_fallthru
      _
    // Predicated region
    $region42: #{decoder_forward.1} parent=1 // pred_check
      _
    $region43: #{decoder_forward.1} parent=1 // pred_check_branch
      %291 = sbr.rel (0) target = $region45
    $region44: #{decoder_forward.1} parent=1 // pred_region
      _
    $region45: #{decoder_forward.1} parent=1 // pred_fallthru
      _
    %292 = vsyncpa [#allocation3], 1
    %293 = vsyncpa [#allocation5], 1

</llo_original>
